<compile_context>
chip_gen: v7x
topology: tpu7x:2x2x1
jax: 0.10.0
libtpu: 0.0.40
codegen_flags: <defaults>
</compile_context>

<pallas_src>
import functools

import jax
import jax.numpy as jnp
from jax.experimental import pallas as pl
from jax.experimental.pallas import tpu as pltpu

IN_DIM = 3
HIDDEN = 100
NUM_ACTIONS = 8          # stand-in for args.num_actions
H_PAD = 128              # hidden padded to one f32 lane width


def _round_up(n, m):
    return ((n + m - 1) // m) * m


def net_kernel(x_ref, w_fc_ref, b_fc_ref, w_h_ref, b_h_ref, out_ref):
    """One batch tile: 3 broadcast FMAs + tanh + one narrow matmul + bias.

    The dueling combine (a - mean(a) + v) is folded into (w_h, b_h) at pack
    time, so every output column is already final: no reduction, no epilogue.
    """
    x = x_ref[...]                         # (TB, 3)   f32
    w_fc = w_fc_ref[...]                   # (3, 128)

    # Hidden layer: K=3 contraction as 3 VPU broadcast multiply-adds instead
    # of a (TB,3)@(3,128) MXU matmul whose contraction dim is mostly padding.
    h = (x[:, 0:1] * w_fc[0:1, :]
         + x[:, 1:2] * w_fc[1:2, :]
         + x[:, 2:3] * w_fc[2:3, :]
         + b_fc_ref[...])                  # (TB, 128)
    h = jnp.tanh(h)                        # EUP slot

    # Folded dueling head: (TB,128)@(128,A) -> final action scores directly.
    out_ref[...] = (jnp.dot(h, w_h_ref[...], preferred_element_type=jnp.float32)
                    + b_h_ref[...])        # (TB, A)


def pack_params(params):
    """Zero-pad the fc layer and fold the dueling combine into the head.

    out[:, j] = (a - mean_j a) + v
              = h @ (W_a[:, j] - mean_j W_a + w_v) + (b_a[j] - mean(b_a) + b_v)
    """
    w_fc, b_fc, w_a, b_a, w_v, b_v = params
    f32 = jnp.float32
    w_fc_p = jnp.zeros((IN_DIM, H_PAD), f32).at[:, :HIDDEN].set(w_fc)
    b_fc_p = jnp.zeros((1, H_PAD), f32).at[:, :HIDDEN].set(b_fc)
    w_out = w_a - jnp.mean(w_a, axis=1, keepdims=True) + w_v      # (100, A)
    b_out = b_a - jnp.mean(b_a, axis=1, keepdims=True) + b_v      # (1, A)
    # Hidden rows [100:128) stay zero -> padded tanh(0)=0 columns are inert.
    w_h = jnp.zeros((H_PAD, NUM_ACTIONS), f32).at[:HIDDEN, :].set(w_out)
    b_h = b_out.astype(f32)
    return w_fc_p, b_fc_p, w_h, b_h


def _pallas_forward(x, packed_params, block_b):
    w_fc_p, b_fc_p, w_h, b_h = packed_params
    B = x.shape[0]

    # Batch tile: multiple of 8 (f32 sublane), capped at block_b.  No wrapper
    # padding of x: Pallas handles partial blocks (OOB reads padded, OOB
    # writes masked); rows are independent so this is safe.
    tb = min(block_b, _round_up(B, 8))
    num_steps = -(-B // tb)

    # The 2-TC split (v7x) only helps with >=2 grid steps; a 1-step grid would
    # just add a second launch + weight DMA.  No-op on v5e/v6e (1 TC/chip).
    semantics = ("parallel",) if num_steps > 1 else ("arbitrary",)

    cost = pl.CostEstimate(
        flops=2 * B * (IN_DIM * H_PAD + H_PAD * NUM_ACTIONS),
        transcendentals=B * H_PAD,
        bytes_accessed=4 * (B * IN_DIM + B * NUM_ACTIONS
                            + IN_DIM * H_PAD + H_PAD
                            + H_PAD * NUM_ACTIONS + NUM_ACTIONS),
    )

    return pl.pallas_call(
        net_kernel,
        out_shape=jax.ShapeDtypeStruct((B, NUM_ACTIONS), jnp.float32),
        grid=(num_steps,),
        in_specs=[
            pl.BlockSpec((tb, IN_DIM), lambda i: (i, 0)),           # x tile
            pl.BlockSpec((IN_DIM, H_PAD), lambda i: (0, 0)),        # w_fc
            pl.BlockSpec((1, H_PAD), lambda i: (0, 0)),             # b_fc
            pl.BlockSpec((H_PAD, NUM_ACTIONS), lambda i: (0, 0)),   # folded head W
            pl.BlockSpec((1, NUM_ACTIONS), lambda i: (0, 0)),       # folded head b
        ],
        out_specs=pl.BlockSpec((tb, NUM_ACTIONS), lambda i: (i, 0)),
        compiler_params=pltpu.CompilerParams(dimension_semantics=semantics),
        cost_estimate=cost,
    )(x, w_fc_p, b_fc_p, w_h, b_h)


@functools.partial(jax.jit, static_argnames=("block_b", "small_batch_threshold"))
def net_forward(x, packed_params, *, block_b=1024, small_batch_threshold=8):
    """Action scores (B, NUM_ACTIONS) for a batch of 3-dim pendulum states."""
    x = x.astype(jnp.float32)
    if x.shape[0] <= small_batch_threshold:
        # Single action-selection: custom-call launch overhead dominates, so
        # use the fused XLA path with the same packed/folded params.
        w_fc_p, b_fc_p, w_h, b_h = packed_params
        h = jnp.tanh(x @ w_fc_p + b_fc_p)
        return h @ w_h + b_h
    return _pallas_forward(x, packed_params, block_b)


def init_params(key):
    """Deterministic init mimicking PyTorch Linear: U(-1/sqrt(fan_in), ...)."""
    def linear(key, fan_in, fan_out):
        kw, kb = jax.random.split(key)
        bound = 1.0 / jnp.sqrt(float(fan_in))
        # stored pre-transposed: (in, out)
        w = jax.random.uniform(kw, (fan_in, fan_out), jnp.float32,
                               minval=-bound, maxval=bound)
        b = jax.random.uniform(kb, (1, fan_out), jnp.float32,
                               minval=-bound, maxval=bound)
        return w, b

    k_fc, k_a, k_v = jax.random.split(key, 3)
    w_fc, b_fc = linear(k_fc, IN_DIM, HIDDEN)
    w_a, b_a = linear(k_a, HIDDEN, NUM_ACTIONS)
    w_v, b_v = linear(k_v, HIDDEN, 1)
    return (w_fc, b_fc, w_a, b_a, w_v, b_v)


def reference_forward(x, params):
    """Pure-JAX reference matching the PyTorch module exactly."""
    w_fc, b_fc, w_a, b_a, w_v, b_v = params
    h = jnp.tanh(x @ w_fc + b_fc)
    a = h @ w_a + b_a
    a = a - jnp.mean(a, axis=-1, keepdims=True)
    v = h @ w_v + b_v
    return a + v


if __name__ == "__main__":
    key = jax.random.PRNGKey(0)
    k_params, k_x = jax.random.split(key)

    params = init_params(k_params)
    packed = pack_params(params)

    # Small action-selection batch: exercise the Pallas path explicitly
    # (threshold forced to 0) and the default small-batch XLA bypass.
    batch = 2
    x = jax.random.normal(k_x, (batch, IN_DIM), jnp.float32)
    ref = reference_forward(x, params)

    out_pallas = jax.block_until_ready(
        net_forward(x, packed, small_batch_threshold=0))
    assert out_pallas.shape == (batch, NUM_ACTIONS)
    assert jnp.allclose(out_pallas, ref, atol=1e-4, rtol=1e-4), float(
        jnp.max(jnp.abs(out_pallas - ref)))

    out_bypass = jax.block_until_ready(net_forward(x, packed))
    assert jnp.allclose(out_bypass, ref, atol=1e-4, rtol=1e-4), float(
        jnp.max(jnp.abs(out_bypass - ref)))

    # Single-step grid with a partial batch block (300 rows, tile 304).
    x_mid = jax.random.normal(k_x, (300, IN_DIM), jnp.float32)
    out_mid = jax.block_until_ready(net_forward(x_mid, packed))
    ref_mid = reference_forward(x_mid, params)
    assert out_mid.shape == (300, NUM_ACTIONS)
    assert jnp.allclose(out_mid, ref_mid, atol=1e-4, rtol=1e-4), float(
        jnp.max(jnp.abs(out_mid - ref_mid)))

    # Multi-step "parallel" grid with a partial final block (2500 = 2*1024+452).
    x_big = jax.random.normal(k_x, (2500, IN_DIM), jnp.float32)
    out_big = jax.block_until_ready(net_forward(x_big, packed))
    ref_big = reference_forward(x_big, params)
    assert out_big.shape == (2500, NUM_ACTIONS)
    assert jnp.allclose(out_big, ref_big, atol=1e-4, rtol=1e-4), float(
        jnp.max(jnp.abs(out_big - ref_big)))

    print("KERNEL_OK")
</pallas_src>

<mosaic_0001>
module attributes {stable_mosaic.version = 11 : i64} {
  func.func @net_kernel(%arg0: i32, %arg1: memref<8x3xf32, #tpu.memory_space<vmem>>, %arg2: memref<3x128xf32, #tpu.memory_space<vmem>>, %arg3: memref<1x128xf32, #tpu.memory_space<vmem>>, %arg4: memref<128x8xf32, #tpu.memory_space<vmem>>, %arg5: memref<1x8xf32, #tpu.memory_space<vmem>>, %arg6: memref<8x8xf32, #tpu.memory_space<vmem>>) attributes {dimension_semantics = [#tpu.dimension_semantics<arbitrary>], iteration_bounds = array<i64: 1>, scalar_prefetch = 0 : i64, scratch_operands = 0 : i64, tpu.core_type = #tpu.core_type<tc>, window_params = [{transform_indices = @transform_0, window_bounds = array<i64: 8, 3>}, {pipeline_mode = #tpu.pipeline_mode<synchronous>, transform_indices = @transform_1, window_bounds = array<i64: 3, 128>}, {pipeline_mode = #tpu.pipeline_mode<synchronous>, transform_indices = @transform_2, window_bounds = array<i64: 1, 128>}, {pipeline_mode = #tpu.pipeline_mode<synchronous>, transform_indices = @transform_3, window_bounds = array<i64: 128, 8>}, {pipeline_mode = #tpu.pipeline_mode<synchronous>, transform_indices = @transform_4, window_bounds = array<i64: 1, 8>}, {transform_indices = @transform_5, window_bounds = array<i64: 8, 8>}]} {
    %c0 = arith.constant 0 : index
    %c0_0 = arith.constant 0 : index
    %0 = vector.load %arg1[%c0, %c0_0] : memref<8x3xf32, #tpu.memory_space<vmem>>, vector<8x3xf32>
    %c0_1 = arith.constant 0 : index
    %c0_2 = arith.constant 0 : index
    %1 = vector.load %arg2[%c0_1, %c0_2] : memref<3x128xf32, #tpu.memory_space<vmem>>, vector<3x128xf32>
    %2 = vector.extract_strided_slice %0 {offsets = [0, 0], sizes = [8, 1], strides = [1, 1]} : vector<8x3xf32> to vector<8x1xf32>
    %3 = vector.extract_strided_slice %1 {offsets = [0, 0], sizes = [1, 128], strides = [1, 1]} : vector<3x128xf32> to vector<1x128xf32>
    %4 = vector.broadcast %2 : vector<8x1xf32> to vector<8x128xf32>
    %5 = vector.broadcast %3 : vector<1x128xf32> to vector<8x128xf32>
    %6 = arith.mulf %4, %5 : vector<8x128xf32>
    %7 = vector.extract_strided_slice %0 {offsets = [0, 1], sizes = [8, 1], strides = [1, 1]} : vector<8x3xf32> to vector<8x1xf32>
    %8 = vector.extract_strided_slice %1 {offsets = [1, 0], sizes = [1, 128], strides = [1, 1]} : vector<3x128xf32> to vector<1x128xf32>
    %9 = vector.broadcast %7 : vector<8x1xf32> to vector<8x128xf32>
    %10 = vector.broadcast %8 : vector<1x128xf32> to vector<8x128xf32>
    %11 = arith.mulf %9, %10 : vector<8x128xf32>
    %12 = arith.addf %6, %11 : vector<8x128xf32>
    %13 = vector.extract_strided_slice %0 {offsets = [0, 2], sizes = [8, 1], strides = [1, 1]} : vector<8x3xf32> to vector<8x1xf32>
    %14 = vector.extract_strided_slice %1 {offsets = [2, 0], sizes = [1, 128], strides = [1, 1]} : vector<3x128xf32> to vector<1x128xf32>
    %15 = vector.broadcast %13 : vector<8x1xf32> to vector<8x128xf32>
    %16 = vector.broadcast %14 : vector<1x128xf32> to vector<8x128xf32>
    %17 = arith.mulf %15, %16 : vector<8x128xf32>
    %18 = arith.addf %12, %17 : vector<8x128xf32>
    %c0_3 = arith.constant 0 : index
    %c0_4 = arith.constant 0 : index
    %19 = vector.load %arg3[%c0_3, %c0_4] : memref<1x128xf32, #tpu.memory_space<vmem>>, vector<1x128xf32>
    %20 = vector.broadcast %19 : vector<1x128xf32> to vector<8x128xf32>
    %21 = arith.addf %18, %20 : vector<8x128xf32>
    %22 = math.tanh %21 : vector<8x128xf32>
    %c0_5 = arith.constant 0 : index
    %c0_6 = arith.constant 0 : index
    %23 = vector.load %arg4[%c0_5, %c0_6] : memref<128x8xf32, #tpu.memory_space<vmem>>, vector<128x8xf32>
    %cst = arith.constant dense<0.000000e+00> : vector<8x8xf32>
    %24 = tpu.matmul %22, %23, %cst {dimension_numbers = #tpu.dot_dimension_numbers<[1], [0], [0], [1], [0, 0, 1, 1], [], []>} : vector<8x128xf32>, vector<128x8xf32>, vector<8x8xf32> -> vector<8x8xf32>
    %c0_7 = arith.constant 0 : index
    %c0_8 = arith.constant 0 : index
    %25 = vector.load %arg5[%c0_7, %c0_8] : memref<1x8xf32, #tpu.memory_space<vmem>>, vector<1x8xf32>
    %26 = vector.broadcast %25 : vector<1x8xf32> to vector<8x8xf32>
    %27 = arith.addf %24, %26 : vector<8x8xf32>
    %c0_9 = arith.constant 0 : index
    %c0_10 = arith.constant 0 : index
    %28 = vector.load %arg6[%c0_9, %c0_10] : memref<8x8xf32, #tpu.memory_space<vmem>>, vector<8x8xf32>
    tpu.vector_store %arg6[%c0_9, %c0_10], %27 {strides = array<i32>} : memref<8x8xf32, #tpu.memory_space<vmem>>, vector<8x8xf32>,
    return
  }
  func.func @transform_0(%arg0: i32) -> (i32, i32) {
    %c0_i32 = arith.constant 0 : i32
    %c0_i32_0 = arith.constant 0 : i32
    return %arg0, %c0_i32 : i32, i32
  }
  func.func @transform_1(%arg0: i32) -> (i32, i32) {
    %c0_i32 = arith.constant 0 : i32
    %c0_i32_0 = arith.constant 0 : i32
    %c0_i32_1 = arith.constant 0 : i32
    return %c0_i32, %c0_i32_0 : i32, i32
  }
  func.func @transform_2(%arg0: i32) -> (i32, i32) {
    %c0_i32 = arith.constant 0 : i32
    %c0_i32_0 = arith.constant 0 : i32
    %c0_i32_1 = arith.constant 0 : i32
    return %c0_i32, %c0_i32_0 : i32, i32
  }
  func.func @transform_3(%arg0: i32) -> (i32, i32) {
    %c0_i32 = arith.constant 0 : i32
    %c0_i32_0 = arith.constant 0 : i32
    %c0_i32_1 = arith.constant 0 : i32
    return %c0_i32, %c0_i32_0 : i32, i32
  }
  func.func @transform_4(%arg0: i32) -> (i32, i32) {
    %c0_i32 = arith.constant 0 : i32
    %c0_i32_0 = arith.constant 0 : i32
    %c0_i32_1 = arith.constant 0 : i32
    return %c0_i32, %c0_i32_0 : i32, i32
  }
  func.func @transform_5(%arg0: i32) -> (i32, i32) {
    %c0_i32 = arith.constant 0 : i32
    %c0_i32_0 = arith.constant 0 : i32
    return %arg0, %c0_i32 : i32, i32
  }
}

</mosaic_0001>

<llo_original>
// kernel: net_forward.1
$region0: #{net_forward.1}
  #allocation0 [shape = 'u32[]', space=smem, size = 0x4, offset = 0x4, fixed_abs, tag = 'smem constant byte address 0x4 - core index']
  #allocation1 [shape = 'u32[144,128]{1,0:T(1,128)}', space=vmem, size = 0x12000, scoped, tag = 'internal scratch']
  %s0 = inlined_call_operand.vmem [shape: f32[2,3], index: 0, kind: input, shape index: {}]
  %s1 = inlined_call_operand.vmem [shape: f32[3,128], index: 1, kind: input, shape index: {}]
  %s2 = inlined_call_operand.vmem [shape: f32[1,128], index: 2, kind: input, shape index: {}]
  %s3 = inlined_call_operand.vmem [shape: f32[128,8], index: 3, kind: input, shape index: {}]
  %s4 = inlined_call_operand.vmem [shape: f32[1,8], index: 4, kind: input, shape index: {}]
  %s5 = inlined_call_operand.hbm [shape: f32[2,8], index: 5, kind: output, shape index: {}]
  %s6 = sld [smem:[#allocation0]]
  $region30: #{net_forward.1} parent=0
    _
  %s8 = ssub.s32 1, %s6
  %s9 = scalar_select 0, %s8, %s6
  $region1: #{net_forward.1} parent=0
    #allocation2 [shape = 'u8[4096]{0}', space=vmem, size = 0x1000, scoped, tag = 'output window, operand 0, single buffered']
    #allocation3 [shape = 's32[1]{0}', space=sflag, size = 0x4, scoped, tag = 'scoped memory for net_forward.1']
    %10 = vsyncpa [#allocation3], 0
    // Predicated region
    $region2: #{net_forward.1} parent=1 // pred_check
      _
    $region3: #{net_forward.1} parent=1 // pred_check_branch
      %12 = sbr.rel (0) target = $region5
    $region4: #{net_forward.1} parent=1 // pred_region
      _
    $region5: #{net_forward.1} parent=1 // pred_fallthru
      _
    // Predicated region
    $region6: #{net_forward.1} parent=1 // pred_check
      _
    $region7: #{net_forward.1} parent=1 // pred_check_branch
      %14 = sbr.rel (0) target = $region9
    $region8: #{net_forward.1} parent=1 // pred_region
      _
    $region9: #{net_forward.1} parent=1 // pred_fallthru
      _
    // Predicated region
    $region10: #{net_forward.1} parent=1 // pred_check
      _
    $region11: #{net_forward.1} parent=1 // pred_check_branch
      %16 = sbr.rel (0) target = $region13
    $region12: #{net_forward.1} parent=1 // pred_region
      _
    $region13: #{net_forward.1} parent=1 // pred_fallthru
      _
    // Predicated region
    $region14: #{net_forward.1} parent=1 // pred_check
      _
    $region15: #{net_forward.1} parent=1 // pred_check_branch
      %18 = sbr.rel (0) target = $region17
    $region16: #{net_forward.1} parent=1 // pred_region
      _
    $region17: #{net_forward.1} parent=1 // pred_fallthru
      _
    // Predicated region
    $region18: #{net_forward.1} parent=1 // pred_check
      _
    $region19: #{net_forward.1} parent=1 // pred_check_branch
      %20 = sbr.rel (0) target = $region21
    $region20: #{net_forward.1} parent=1 // pred_region
      _
    $region21: #{net_forward.1} parent=1 // pred_fallthru
      _
    %v21 = vld [vmem:[%s0] sm:$0xff]
    %v22 = vld [vmem:[%s1] sm:$0x7]
    %24 = vset.pattern.permute.xlu0 0
    %25 = vperm.xlu0 %24, %v21
    %v26 = vpop.permute.xlu0 %25
    %v28 = vlaneseq
    %v29 = vshrl.u32 %v28, 7
    %v30 = vsub.s32 0, %v29
    %v31 = vrot.slane %v22, %v30
    %v32 = vmul.f32 %v26, %v31
    %33 = vset.pattern.permute.xlu0 1
    %34 = vperm.xlu0 %33, %v21
    %v35 = vpop.permute.xlu0 %34
    %v37 = vlaneseq
    %v38 = vshrl.u32 %v37, 7
    %v39 = vsub.s32 1, %v38
    %v40 = vrot.slane %v22, %v39
    %v41 = vmul.f32 %v35, %v40
    %v42 = vadd.f32 %v32, %v41
    %43 = vset.pattern.permute.xlu0 2
    %44 = vperm.xlu0 %43, %v21
    %v45 = vpop.permute.xlu0 %44
    %v47 = vlaneseq
    %v48 = vshrl.u32 %v47, 7
    %v49 = vsub.s32 2, %v48
    %v50 = vrot.slane %v22, %v49
    %v51 = vmul.f32 %v45, %v50
    %v52 = vadd.f32 %v42, %v51
    %v53 = vld [vmem:[%s2] sm:$0x1]
    %v55 = vlaneseq
    %v56 = vshrl.u32 %v55, 7
    %v57 = vsub.s32 0, %v56
    %v58 = vrot.slane %v53, %v57
    %v60 = vadd.f32 %v52, %v58
    %v61 = vtanh.pop %v60
    %v62 = vld [vmem:[%s3] sm:$0xff]
    %v63 = vld [vmem:[%s3 + $0x8] sm:$0xff]
    %v64 = vld [vmem:[%s3 + $0x10] sm:$0xff]
    %v65 = vld [vmem:[%s3 + $0x18] sm:$0xff]
    %v66 = vld [vmem:[%s3 + $0x20] sm:$0xff]
    %v67 = vld [vmem:[%s3 + $0x28] sm:$0xff]
    %v68 = vld [vmem:[%s3 + $0x30] sm:$0xff]
    %v69 = vld [vmem:[%s3 + $0x38] sm:$0xff]
    %v70 = vld [vmem:[%s3 + $0x40] sm:$0xff]
    %v71 = vld [vmem:[%s3 + $0x48] sm:$0xff]
    %v72 = vld [vmem:[%s3 + $0x50] sm:$0xff]
    %v73 = vld [vmem:[%s3 + $0x58] sm:$0xff]
    %v74 = vld [vmem:[%s3 + $0x60] sm:$0xff]
    %v75 = vld [vmem:[%s3 + $0x68] sm:$0xff]
    %v76 = vld [vmem:[%s3 + $0x70] sm:$0xff]
    %v77 = vld [vmem:[%s3 + $0x78] sm:$0xff]
    %v78 = vld [vmem:[%s4] sm:$0x1]
    %v80 = vlaneseq
    %v81 = vshrl.u32 %v80, 7
    %v82 = vsub.s32 0, %v81
    %v83 = vrot.slane %v78, %v82
    %85 = vmatprep.subr.mxu0 0.0
    %86 = vmatpush1.msra.mxu0 %v62
    %87 = vmatprep.subr.mxu0 0.0
    %88 = vmatpush1.msra.mxu0 %v63
    %89 = vmatprep.subr.mxu0 0.0
    %90 = vmatpush1.msra.mxu0 %v64
    %91 = vmatprep.subr.mxu0 0.0
    %92 = vmatpush1.msra.mxu0 %v65
    %93 = vmatprep.subr.mxu0 0.0
    %94 = vmatpush1.msra.mxu0 %v66
    %95 = vmatprep.subr.mxu0 0.0
    %96 = vmatpush1.msra.mxu0 %v67
    %97 = vmatprep.subr.mxu0 0.0
    %98 = vmatpush1.msra.mxu0 %v68
    %99 = vmatprep.subr.mxu0 0.0
    %100 = vmatpush1.msra.mxu0 %v69
    %101 = vmatprep.subr.mxu0 0.0
    %102 = vmatpush1.msra.mxu0 %v70
    %103 = vmatprep.subr.mxu0 0.0
    %104 = vmatpush1.msra.mxu0 %v71
    %105 = vmatprep.subr.mxu0 0.0
    %106 = vmatpush1.msra.mxu0 %v72
    %107 = vmatprep.subr.mxu0 0.0
    %108 = vmatpush1.msra.mxu0 %v73
    %109 = vmatprep.subr.mxu0 0.0
    %110 = vmatpush1.msra.mxu0 %v74
    %111 = vmatprep.subr.mxu0 0.0
    %112 = vmatpush1.msra.mxu0 %v75
    %113 = vmatprep.subr.mxu0 0.0
    %114 = vmatpush1.msra.mxu0 %v76
    %115 = vmatprep.subr.mxu0 0.0
    %116 = vmatpush1.msra.mxu0 %v77
    %117 = vmatprep.subr.mxu0 0.0
    %118 = vmatpush1.msra.mxu0 0.0
    %119 = vmatprep.subr.mxu0 0.0
    %120 = vmatpush1.msra.mxu0 0.0
    %121 = vmatprep.subr.mxu0 0.0
    %122 = vmatpush1.msra.mxu0 0.0
    %123 = vmatprep.subr.mxu0 0.0
    %124 = vmatpush1.msra.mxu0 0.0
    %125 = vmatprep.subr.mxu0 0.0
    %126 = vmatpush1.msra.mxu0 0.0
    %127 = vmatprep.subr.mxu0 0.0
    %128 = vmatpush1.msra.mxu0 0.0
    %129 = vmatprep.subr.mxu0 0.0
    %130 = vmatpush1.msra.mxu0 0.0
    %131 = vmatprep.subr.mxu0 0.0
    %132 = vmatpush1.msra.mxu0 0.0
    %133 = vmatprep.subr.mxu0 0.0
    %134 = vmatpush1.msra.mxu0 0.0
    %135 = vmatprep.subr.mxu0 0.0
    %136 = vmatpush1.msra.mxu0 0.0
    %137 = vmatprep.subr.mxu0 0.0
    %138 = vmatpush1.msra.mxu0 0.0
    %139 = vmatprep.subr.mxu0 0.0
    %140 = vmatpush1.msra.mxu0 0.0
    %141 = vmatprep.subr.mxu0 0.0
    %142 = vmatpush1.msra.mxu0 0.0
    %143 = vmatprep.subr.mxu0 0.0
    %144 = vmatpush1.msra.mxu0 0.0
    %145 = vmatprep.subr.mxu0 0.0
    %146 = vmatpush1.msra.mxu0 0.0
    %147 = vmatprep.subr.mxu0 0.0
    %148 = vmatpush1.msra.mxu0 0.0
    %149 = vmatprep.mubr.f32.mxu0 0.0
    %150 = vmatmul.mubr.f32.gmra.mrb[0].mxu0 %v61
    %v151 = vpop.f32.mrb[0].mxu0
    %v152 = vadd.f32 %v83, %v151
    %v153 = vpop.f32.mrb[0].mxu0
    %154 = vdwg.mxu0
    %vm155 = vcmask 64512
    %156 = vst.msk [vmem:[#allocation2] sm:$0xff] %vm155, %v152
    // Predicated region
    $region22: #{net_forward.1} parent=1 // pred_check
      _
    $region23: #{net_forward.1} parent=1 // pred_check_branch
      %158 = sbr.rel (0) target = $region25
    $region24: #{net_forward.1} parent=1 // pred_region
      %s160 = ssub.s32 128, 32
      %161 = vsyncadd [#allocation3], %s160
      %s162 = sshll.u32 [#allocation2], 4
      %s163 = int_to_ptr.vmem [resolvable:$true] %s162
      %168 = dma.vmem_to_hbm [thread:$0]  %s163, 32, %s5, [#allocation3], 32, 32, 2
    $region25: #{net_forward.1} parent=1 // pred_fallthru
      _
    // Predicated region
    $region26: #{net_forward.1} parent=1 // pred_check
      _
    $region27: #{net_forward.1} parent=1 // pred_check_branch
      %170 = sbr.rel (0) target = $region29
    $region28: #{net_forward.1} parent=1 // pred_region
      %171 = dma.done [#allocation3], 128
    $region29: #{net_forward.1} parent=1 // pred_fallthru
      _
    %172 = vsyncpa [#allocation3], 1

</llo_original>
